<compile_context>
chip_gen: v7x
topology: tpu7x:2x2x1
jax: 0.10.0
libtpu: 0.0.40
codegen_flags: <defaults>
</compile_context>

<pallas_src>
import jax
import jax.numpy as jnp
from jax.experimental import pallas as pl
from jax.experimental.pallas import tpu as pltpu


def _make_scse_kernel(nb: int):
    def kernel(u_ref, w1_ref, w2_ref, ws_ref, o_ref):
        u = u_ref[0].astype(jnp.float32)                       # (R, HW)

        # ---- cSE: AdaptiveAvgPool2d(1) + squeeze/excite 1x1 convs ------------
        z = jnp.mean(u, axis=-1, keepdims=True)                                # (R, 1)
        z = jnp.dot(w1_ref[...], z, preferred_element_type=jnp.float32)        # (Nb*C/2, 1)
        z = jnp.dot(w2_ref[...], z, preferred_element_type=jnp.float32)        # (R, 1)
        z = jax.nn.sigmoid(z)                                  # channel gate   (R, 1)

        # ---- sSE: 1x1 conv C->1 over every pixel ------------------------------
        if nb > 1:
            # Block matrix = per-batch weighted channel sum fused with the
            # broadcast back onto that batch's rows, in one MXU op.
            q = jnp.dot(ws_ref[...], u, preferred_element_type=jnp.float32)    # (R, HW)
        else:
            # No folding: avoid the M=1 matmul; VPU multiply + sublane reduce.
            q = jnp.sum(ws_ref[...] * u, axis=0, keepdims=True)                # (1, HW)
        q = jax.nn.sigmoid(q)                                  # spatial gate

        # ---- fused scSE epilogue: U*z + U*q == U*(z+q) -------------------------
        o_ref[0] = (u * (z + q)).astype(o_ref.dtype)

    return kernel


def scse_forward(u_nchw, w_squeeze, w_excite, w_spatial):
    """u_nchw: (N, C, H, W); conv weights follow PyTorch (out, in, 1, 1)."""
    N, C, H, W = u_nchw.shape
    HW = H * W
    Cs = C // 2

    w1 = w_squeeze.reshape(Cs, C).astype(jnp.float32)   # Conv_Squeeze
    w2 = w_excite.reshape(C, Cs).astype(jnp.float32)    # Conv_Excitation
    ws = w_spatial.reshape(1, C).astype(jnp.float32)    # sSE Conv1x1

    # Fold Nb batches into the sublane dimension when C < 8 (fp32 sublane tile).
    nb = 1
    if C < 8 and 8 % C == 0 and N % (8 // C) == 0:
        nb = 8 // C
    G, R = N // nb, nb * C

    u = u_nchw.reshape(G, R, HW)

    eye = jnp.eye(nb, dtype=jnp.float32)
    w1f = jnp.kron(eye, w1)                                     # (nb*Cs, R) block-diag
    w2f = jnp.kron(eye, w2)                                     # (R, nb*Cs) block-diag
    if nb > 1:
        wsf = jnp.kron(eye, jnp.ones((C, 1), jnp.float32) @ ws)  # (R, R) block matrix
    else:
        wsf = ws.T                                               # (C, 1) column

    # VMEM budget: input + output blocks, double-buffered, plus the tiny weights.
    block_bytes = R * HW * u.dtype.itemsize
    needed = 4 * block_bytes + 4 * 4 * (w1f.size + w2f.size + wsf.size)
    vmem_limit = int(min(max(2 * needed, 16 << 20), 96 << 20))

    out = pl.pallas_call(
        _make_scse_kernel(nb),
        out_shape=jax.ShapeDtypeStruct((G, R, HW), u.dtype),
        grid_spec=pltpu.PrefetchScalarGridSpec(
            num_scalar_prefetch=0,
            grid=(G,),
            in_specs=[
                pl.BlockSpec((1, R, HW), lambda g: (g, 0, 0)),
                pl.BlockSpec(w1f.shape, lambda g: (0, 0)),
                pl.BlockSpec(w2f.shape, lambda g: (0, 0)),
                pl.BlockSpec(wsf.shape, lambda g: (0, 0)),
            ],
            out_specs=pl.BlockSpec((1, R, HW), lambda g: (g, 0, 0)),
        ),
        compiler_params=pltpu.CompilerParams(
            dimension_semantics=("parallel",),
            vmem_limit_bytes=vmem_limit,
        ),
    )(u, w1f, w2f, wsf)
    return out.reshape(N, C, H, W)


def scse_reference(u, w_squeeze, w_excite, w_spatial):
    """Pure-JAX reference matching the PyTorch module."""
    N, C, H, W = u.shape
    z = u.mean(axis=(2, 3), keepdims=True)                               # (N,C,1,1)
    z = jnp.einsum("oc,nchw->nohw", w_squeeze.reshape(C // 2, C), z)
    z = jnp.einsum("oc,nchw->nohw", w_excite.reshape(C, C // 2), z)
    z = jax.nn.sigmoid(z)
    q = jax.nn.sigmoid(jnp.einsum("oc,nchw->nohw", w_spatial.reshape(1, C), u))
    return u * z + u * q


if __name__ == "__main__":
    key = jax.random.PRNGKey(0)
    k_u, k_w1, k_w2, k_ws = jax.random.split(key, 4)

    N, C, H, W = 2, 4, 16, 16
    U = jax.random.normal(k_u, (N, C, H, W), dtype=jnp.float32)

    # Deterministic synthetic weights (shapes match nn.Conv2d(..., 1, bias=False)).
    w_squeeze = jax.random.normal(k_w1, (C // 2, C, 1, 1), dtype=jnp.float32) * 0.5
    w_excite = jax.random.normal(k_w2, (C, C // 2, 1, 1), dtype=jnp.float32) * 0.5
    w_spatial = jax.random.normal(k_ws, (1, C, 1, 1), dtype=jnp.float32) * 0.5

    out = scse_forward(U, w_squeeze, w_excite, w_spatial)
    out = jax.block_until_ready(out)

    ref = scse_reference(U, w_squeeze, w_excite, w_spatial)
    assert out.shape == (N, C, H, W)
    assert jnp.allclose(out, ref, atol=1e-5, rtol=1e-5), "mismatch vs reference"

    print("KERNEL_OK")
</pallas_src>

<mosaic_0001>
module attributes {stable_mosaic.version = 11 : i64} {
  func.func @kernel(%arg0: i32, %arg1: memref<1x8x256xf32, #tpu.memory_space<vmem>>, %arg2: memref<4x8xf32, #tpu.memory_space<vmem>>, %arg3: memref<8x4xf32, #tpu.memory_space<vmem>>, %arg4: memref<8x8xf32, #tpu.memory_space<vmem>>, %arg5: memref<1x8x256xf32, #tpu.memory_space<vmem>>) attributes {dimension_semantics = [#tpu.dimension_semantics<parallel>], iteration_bounds = array<i64: 1>, scalar_prefetch = 0 : i64, scratch_operands = 0 : i64, tpu.core_type = #tpu.core_type<tc>, window_params = [{transform_indices = @transform_0, window_bounds = array<i64: 1, 8, 256>}, {pipeline_mode = #tpu.pipeline_mode<synchronous>, transform_indices = @transform_1, window_bounds = array<i64: 4, 8>}, {pipeline_mode = #tpu.pipeline_mode<synchronous>, transform_indices = @transform_2, window_bounds = array<i64: 8, 4>}, {pipeline_mode = #tpu.pipeline_mode<synchronous>, transform_indices = @transform_3, window_bounds = array<i64: 8, 8>}, {transform_indices = @transform_4, window_bounds = array<i64: 1, 8, 256>}]} {
    %c0 = arith.constant 0 : index
    %c0_0 = arith.constant 0 : index
    %c0_1 = arith.constant 0 : index
    %0 = vector.load %arg1[%c0, %c0_0, %c0_1] : memref<1x8x256xf32, #tpu.memory_space<vmem>>, vector<1x8x256xf32>
    %1 = vector.shape_cast %0 : vector<1x8x256xf32> to vector<8x256xf32>
    %cst = arith.constant dense<0.000000e+00> : vector<8xf32>
    %2 = vector.multi_reduction <add>, %1, %cst [1] : vector<8x256xf32> to vector<8xf32>
    %3 = vector.shape_cast %2 : vector<8xf32> to vector<8x1xf32>
    %cst_2 = arith.constant 2.560000e+02 : f32
    %4 = vector.broadcast %cst_2 : f32 to vector<8x1xf32>
    %5 = arith.divf %3, %4 : vector<8x1xf32>
    %c0_3 = arith.constant 0 : index
    %c0_4 = arith.constant 0 : index
    %6 = vector.load %arg2[%c0_3, %c0_4] : memref<4x8xf32, #tpu.memory_space<vmem>>, vector<4x8xf32>
    %cst_5 = arith.constant dense<0.000000e+00> : vector<4x1xf32>
    %7 = tpu.matmul %6, %5, %cst_5 {dimension_numbers = #tpu.dot_dimension_numbers<[1], [0], [0], [1], [0, 0, 1, 1], [], []>} : vector<4x8xf32>, vector<8x1xf32>, vector<4x1xf32> -> vector<4x1xf32>
    %c0_6 = arith.constant 0 : index
    %c0_7 = arith.constant 0 : index
    %8 = vector.load %arg3[%c0_6, %c0_7] : memref<8x4xf32, #tpu.memory_space<vmem>>, vector<8x4xf32>
    %cst_8 = arith.constant dense<0.000000e+00> : vector<8x1xf32>
    %9 = tpu.matmul %8, %7, %cst_8 {dimension_numbers = #tpu.dot_dimension_numbers<[1], [0], [0], [1], [0, 0, 1, 1], [], []>} : vector<8x4xf32>, vector<4x1xf32>, vector<8x1xf32> -> vector<8x1xf32>
    %10 = arith.negf %9 : vector<8x1xf32>
    %11 = math.exp %10 : vector<8x1xf32>
    %cst_9 = arith.constant 1.000000e+00 : f32
    %12 = vector.broadcast %cst_9 : f32 to vector<8x1xf32>
    %13 = arith.addf %12, %11 : vector<8x1xf32>
    %14 = arith.divf %12, %13 : vector<8x1xf32>
    %c0_10 = arith.constant 0 : index
    %c0_11 = arith.constant 0 : index
    %15 = vector.load %arg4[%c0_10, %c0_11] : memref<8x8xf32, #tpu.memory_space<vmem>>, vector<8x8xf32>
    %cst_12 = arith.constant dense<0.000000e+00> : vector<8x256xf32>
    %16 = tpu.matmul %15, %1, %cst_12 {dimension_numbers = #tpu.dot_dimension_numbers<[1], [0], [0], [1], [0, 0, 1, 1], [], []>} : vector<8x8xf32>, vector<8x256xf32>, vector<8x256xf32> -> vector<8x256xf32>
    %17 = arith.negf %16 : vector<8x256xf32>
    %18 = math.exp %17 : vector<8x256xf32>
    %cst_13 = arith.constant 1.000000e+00 : f32
    %19 = vector.broadcast %cst_13 : f32 to vector<8x256xf32>
    %20 = arith.addf %19, %18 : vector<8x256xf32>
    %21 = arith.divf %19, %20 : vector<8x256xf32>
    %22 = vector.broadcast %14 : vector<8x1xf32> to vector<8x256xf32>
    %23 = arith.addf %22, %21 : vector<8x256xf32>
    %24 = arith.mulf %1, %23 : vector<8x256xf32>
    %c0_14 = arith.constant 0 : index
    %c0_15 = arith.constant 0 : index
    %c0_16 = arith.constant 0 : index
    %25 = vector.load %arg5[%c0_14, %c0_15, %c0_16] : memref<1x8x256xf32, #tpu.memory_space<vmem>>, vector<1x8x256xf32>
    %26 = vector.shape_cast %25 : vector<1x8x256xf32> to vector<8x256xf32>
    %27 = vector.shape_cast %24 : vector<8x256xf32> to vector<1x8x256xf32>
    tpu.vector_store %arg5[%c0_14, %c0_15, %c0_16], %27 {strides = array<i32>} : memref<1x8x256xf32, #tpu.memory_space<vmem>>, vector<1x8x256xf32>,
    return
  }
  func.func @transform_0(%arg0: i32) -> (i32, i32, i32) {
    %c0_i32 = arith.constant 0 : i32
    %c0_i32_0 = arith.constant 0 : i32
    %c0_i32_1 = arith.constant 0 : i32
    return %arg0, %c0_i32, %c0_i32_0 : i32, i32, i32
  }
  func.func @transform_1(%arg0: i32) -> (i32, i32) {
    %c0_i32 = arith.constant 0 : i32
    %c0_i32_0 = arith.constant 0 : i32
    %c0_i32_1 = arith.constant 0 : i32
    return %c0_i32, %c0_i32_0 : i32, i32
  }
  func.func @transform_2(%arg0: i32) -> (i32, i32) {
    %c0_i32 = arith.constant 0 : i32
    %c0_i32_0 = arith.constant 0 : i32
    %c0_i32_1 = arith.constant 0 : i32
    return %c0_i32, %c0_i32_0 : i32, i32
  }
  func.func @transform_3(%arg0: i32) -> (i32, i32) {
    %c0_i32 = arith.constant 0 : i32
    %c0_i32_0 = arith.constant 0 : i32
    %c0_i32_1 = arith.constant 0 : i32
    return %c0_i32, %c0_i32_0 : i32, i32
  }
  func.func @transform_4(%arg0: i32) -> (i32, i32, i32) {
    %c0_i32 = arith.constant 0 : i32
    %c0_i32_0 = arith.constant 0 : i32
    %c0_i32_1 = arith.constant 0 : i32
    return %arg0, %c0_i32, %c0_i32_0 : i32, i32, i32
  }
}

</mosaic_0001>

<llo_original>
// kernel: tpu_custom_call.1
$region0: #{tpu_custom_call.1}
  #allocation0 [shape = 'u32[]', space=smem, size = 0x4, offset = 0x4, fixed_abs, tag = 'smem constant byte address 0x4 - core index']
  #allocation1 [shape = 'u32[144,128]{1,0:T(1,128)}', space=vmem, size = 0x12000, scoped, tag = 'internal scratch']
  %s0 = inlined_call_operand.hbm [shape: f32[1,8,256], index: 0, kind: input, shape index: {}]
  %s1 = inlined_call_operand.vmem [shape: f32[4,8], index: 1, kind: input, shape index: {}]
  %s2 = inlined_call_operand.vmem [shape: f32[8,4], index: 2, kind: input, shape index: {}]
  %s3 = inlined_call_operand.vmem [shape: f32[8,8], index: 3, kind: input, shape index: {}]
  %s4 = inlined_call_operand.hbm [shape: f32[1,8,256], index: 4, kind: output, shape index: {}]
  %s5 = sld [smem:[#allocation0]]
  $region30: #{tpu_custom_call.1} parent=0
    _
  %s7 = ssub.s32 1, %s5
  %s8 = scalar_select 0, %s7, %s5
  $region1: #{tpu_custom_call.1} parent=0
    #allocation2 [shape = 'u8[8192]{0}', space=vmem, size = 0x2000, scoped, tag = 'input window, operand 0, single buffered']
    #allocation3 [shape = 's32[1]{0}', space=sflag, size = 0x4, scoped, tag = 'scoped memory for tpu_custom_call.1']
    #allocation4 [shape = 's32[1]{0}', space=sflag, size = 0x4, scoped, tag = 'scoped memory for tpu_custom_call.1']
    #allocation5 [shape = 'u8[8192]{0}', space=vmem, size = 0x2000, scoped, tag = 'output window, operand 0, single buffered']
    %9 = vsyncpa [#allocation3], 0
    %10 = vsyncpa [#allocation4], 0
    // Predicated region
    $region2: #{tpu_custom_call.1} parent=1 // pred_check
      _
    $region3: #{tpu_custom_call.1} parent=1 // pred_check_branch
      %12 = sbr.rel (0) target = $region5
    $region4: #{tpu_custom_call.1} parent=1 // pred_region
      %s14 = ssub.s32 256, 256
      %15 = vsyncadd [#allocation3], %s14
      %s17 = sshll.u32 [#allocation2], 4
      %s18 = int_to_ptr.vmem [resolvable:$true] %s17
      %20 = dma.hbm_to_vmem [thread:$0]  %s0, 256, %s18, [#allocation3]
    $region5: #{tpu_custom_call.1} parent=1 // pred_fallthru
      _
    // Predicated region
    $region6: #{tpu_custom_call.1} parent=1 // pred_check
      _
    $region7: #{tpu_custom_call.1} parent=1 // pred_check_branch
      %22 = sbr.rel (0) target = $region9
    $region8: #{tpu_custom_call.1} parent=1 // pred_region
      _
    $region9: #{tpu_custom_call.1} parent=1 // pred_fallthru
      _
    // Predicated region
    $region10: #{tpu_custom_call.1} parent=1 // pred_check
      _
    $region11: #{tpu_custom_call.1} parent=1 // pred_check_branch
      %24 = sbr.rel (0) target = $region13
    $region12: #{tpu_custom_call.1} parent=1 // pred_region
      _
    $region13: #{tpu_custom_call.1} parent=1 // pred_fallthru
      _
    // Predicated region
    $region14: #{tpu_custom_call.1} parent=1 // pred_check
      _
    $region15: #{tpu_custom_call.1} parent=1 // pred_check_branch
      %26 = sbr.rel (0) target = $region17
    $region16: #{tpu_custom_call.1} parent=1 // pred_region
      _
    $region17: #{tpu_custom_call.1} parent=1 // pred_fallthru
      _
    // Predicated region
    $region18: #{tpu_custom_call.1} parent=1 // pred_check
      _
    $region19: #{tpu_custom_call.1} parent=1 // pred_check_branch
      %28 = sbr.rel (0) target = $region21
    $region20: #{tpu_custom_call.1} parent=1 // pred_region
      %29 = dma.done [#allocation3], 256
    $region21: #{tpu_custom_call.1} parent=1 // pred_fallthru
      _
    %v30 = vld [vmem:[#allocation2] sm:$0xff]
    %v31 = vld [vmem:[#allocation2 + $0x8] sm:$0xff]
    %v32 = vadd.f32 %v30, %v31
    %33 = vadd.xlane.f32.xlu0 %v32
    %v34 = vpop.xlane.xlu0 %33
    %v35 = vrcp.pop 256.0
    %v36 = vmul.f32 %v34, %v35
    %v37 = vld [vmem:[%s1] sm:$0xf]
    %vm38 = vcmask 64512
    %v40 = vsel %vm38, %v37, 0
    %42 = vmatprep.subr.mxu0 0.0
    %43 = vmatpush1.msra.mxu0 %v36
    %44 = vmatprep.subr.mxu0 0.0
    %45 = vmatpush1.msra.mxu0 0.0
    %46 = vmatprep.subr.mxu0 0.0
    %47 = vmatpush1.msra.mxu0 0.0
    %48 = vmatprep.subr.mxu0 0.0
    %49 = vmatpush1.msra.mxu0 0.0
    %50 = vmatprep.subr.mxu0 0.0
    %51 = vmatpush1.msra.mxu0 0.0
    %52 = vmatprep.subr.mxu0 0.0
    %53 = vmatpush1.msra.mxu0 0.0
    %54 = vmatprep.subr.mxu0 0.0
    %55 = vmatpush1.msra.mxu0 0.0
    %56 = vmatprep.subr.mxu0 0.0
    %57 = vmatpush1.msra.mxu0 0.0
    %58 = vmatprep.subr.mxu0 0.0
    %59 = vmatpush1.msra.mxu0 0.0
    %60 = vmatprep.subr.mxu0 0.0
    %61 = vmatpush1.msra.mxu0 0.0
    %62 = vmatprep.subr.mxu0 0.0
    %63 = vmatpush1.msra.mxu0 0.0
    %64 = vmatprep.subr.mxu0 0.0
    %65 = vmatpush1.msra.mxu0 0.0
    %66 = vmatprep.subr.mxu0 0.0
    %67 = vmatpush1.msra.mxu0 0.0
    %68 = vmatprep.subr.mxu0 0.0
    %69 = vmatpush1.msra.mxu0 0.0
    %70 = vmatprep.subr.mxu0 0.0
    %71 = vmatpush1.msra.mxu0 0.0
    %72 = vmatprep.subr.mxu0 0.0
    %73 = vmatpush1.msra.mxu0 0.0
    %74 = vmatprep.subr.mxu0 0.0
    %75 = vmatpush1.msra.mxu0 0.0
    %76 = vmatprep.subr.mxu0 0.0
    %77 = vmatpush1.msra.mxu0 0.0
    %78 = vmatprep.subr.mxu0 0.0
    %79 = vmatpush1.msra.mxu0 0.0
    %80 = vmatprep.subr.mxu0 0.0
    %81 = vmatpush1.msra.mxu0 0.0
    %82 = vmatprep.subr.mxu0 0.0
    %83 = vmatpush1.msra.mxu0 0.0
    %84 = vmatprep.subr.mxu0 0.0
    %85 = vmatpush1.msra.mxu0 0.0
    %86 = vmatprep.subr.mxu0 0.0
    %87 = vmatpush1.msra.mxu0 0.0
    %88 = vmatprep.subr.mxu0 0.0
    %89 = vmatpush1.msra.mxu0 0.0
    %90 = vmatprep.subr.mxu0 0.0
    %91 = vmatpush1.msra.mxu0 0.0
    %92 = vmatprep.subr.mxu0 0.0
    %93 = vmatpush1.msra.mxu0 0.0
    %94 = vmatprep.subr.mxu0 0.0
    %95 = vmatpush1.msra.mxu0 0.0
    %96 = vmatprep.subr.mxu0 0.0
    %97 = vmatpush1.msra.mxu0 0.0
    %98 = vmatprep.subr.mxu0 0.0
    %99 = vmatpush1.msra.mxu0 0.0
    %100 = vmatprep.subr.mxu0 0.0
    %101 = vmatpush1.msra.mxu0 0.0
    %102 = vmatprep.subr.mxu0 0.0
    %103 = vmatpush1.msra.mxu0 0.0
    %104 = vmatprep.subr.mxu0 0.0
    %105 = vmatpush1.msra.mxu0 0.0
    %106 = vmatprep.mubr.f32.mxu0 0.0
    %107 = vmatmul.mubr.f32.gmra.mrb[0].mxu0 %v40
    %v108 = vpop.f32.mrb[0].mxu0
    %v109 = vadd.f32 0.0, %v108
    %v110 = vpop.f32.mrb[0].mxu0
    %111 = vdwg.mxu0
    %v112 = vld [vmem:[%s2] sm:$0xff]
    %vm113 = vcmask 31744
    %v115 = vsel %vm113, %v112, 0
    %vm117 = vcmask 1043456
    %v119 = vsel %vm117, %v109, 0
    %121 = vmatprep.subr.mxu0 0.0
    %122 = vmatpush1.msra.mxu0 %v119
    %123 = vmatprep.subr.mxu0 0.0
    %124 = vmatpush1.msra.mxu0 0.0
    %125 = vmatprep.subr.mxu0 0.0
    %126 = vmatpush1.msra.mxu0 0.0
    %127 = vmatprep.subr.mxu0 0.0
    %128 = vmatpush1.msra.mxu0 0.0
    %129 = vmatprep.subr.mxu0 0.0
    %130 = vmatpush1.msra.mxu0 0.0
    %131 = vmatprep.subr.mxu0 0.0
    %132 = vmatpush1.msra.mxu0 0.0
    %133 = vmatprep.subr.mxu0 0.0
    %134 = vmatpush1.msra.mxu0 0.0
    %135 = vmatprep.subr.mxu0 0.0
    %136 = vmatpush1.msra.mxu0 0.0
    %137 = vmatprep.subr.mxu0 0.0
    %138 = vmatpush1.msra.mxu0 0.0
    %139 = vmatprep.subr.mxu0 0.0
    %140 = vmatpush1.msra.mxu0 0.0
    %141 = vmatprep.subr.mxu0 0.0
    %142 = vmatpush1.msra.mxu0 0.0
    %143 = vmatprep.subr.mxu0 0.0
    %144 = vmatpush1.msra.mxu0 0.0
    %145 = vmatprep.subr.mxu0 0.0
    %146 = vmatpush1.msra.mxu0 0.0
    %147 = vmatprep.subr.mxu0 0.0
    %148 = vmatpush1.msra.mxu0 0.0
    %149 = vmatprep.subr.mxu0 0.0
    %150 = vmatpush1.msra.mxu0 0.0
    %151 = vmatprep.subr.mxu0 0.0
    %152 = vmatpush1.msra.mxu0 0.0
    %153 = vmatprep.subr.mxu0 0.0
    %154 = vmatpush1.msra.mxu0 0.0
    %155 = vmatprep.subr.mxu0 0.0
    %156 = vmatpush1.msra.mxu0 0.0
    %157 = vmatprep.subr.mxu0 0.0
    %158 = vmatpush1.msra.mxu0 0.0
    %159 = vmatprep.subr.mxu0 0.0
    %160 = vmatpush1.msra.mxu0 0.0
    %161 = vmatprep.subr.mxu0 0.0
    %162 = vmatpush1.msra.mxu0 0.0
    %163 = vmatprep.subr.mxu0 0.0
    %164 = vmatpush1.msra.mxu0 0.0
    %165 = vmatprep.subr.mxu0 0.0
    %166 = vmatpush1.msra.mxu0 0.0
    %167 = vmatprep.subr.mxu0 0.0
    %168 = vmatpush1.msra.mxu0 0.0
    %169 = vmatprep.subr.mxu0 0.0
    %170 = vmatpush1.msra.mxu0 0.0
    %171 = vmatprep.subr.mxu0 0.0
    %172 = vmatpush1.msra.mxu0 0.0
    %173 = vmatprep.subr.mxu0 0.0
    %174 = vmatpush1.msra.mxu0 0.0
    %175 = vmatprep.subr.mxu0 0.0
    %176 = vmatpush1.msra.mxu0 0.0
    %177 = vmatprep.subr.mxu0 0.0
    %178 = vmatpush1.msra.mxu0 0.0
    %179 = vmatprep.subr.mxu0 0.0
    %180 = vmatpush1.msra.mxu0 0.0
    %181 = vmatprep.subr.mxu0 0.0
    %182 = vmatpush1.msra.mxu0 0.0
    %183 = vmatprep.subr.mxu0 0.0
    %184 = vmatpush1.msra.mxu0 0.0
    %185 = vmatprep.mubr.f32.mxu0 0.0
    %186 = vmatmul.mubr.f32.gmra.mrb[0].mxu0 %v115
    %v187 = vpop.f32.mrb[0].mxu0
    %v188 = vadd.f32 0.0, %v187
    %v189 = vpop.f32.mrb[0].mxu0
    %190 = vdwg.mxu0
    %v191 = vxor.u32 %v188, 2147483648
    %v192 = vmul.f32 %v191, 1.442695
    %v193 = vpow.pop %v192
    %v194 = vadd.f32 %v193, 1.0
    %v195 = vrcp.pop %v194
    %v196 = vmul.f32 1.0, %v195
    %v197 = vld [vmem:[%s3] sm:$0xff]
    %v199 = vsel %vm38, %v197, 0
    %201 = vmatprep.subr.mxu0 %v31
    %202 = vmatpush1.msra.mxu0 %v30
    %203 = vmatprep.subr.mxu0 0.0
    %204 = vmatpush1.msra.mxu0 0.0
    %205 = vmatprep.subr.mxu0 0.0
    %206 = vmatpush1.msra.mxu0 0.0
    %207 = vmatprep.subr.mxu0 0.0
    %208 = vmatpush1.msra.mxu0 0.0
    %209 = vmatprep.subr.mxu0 0.0
    %210 = vmatpush1.msra.mxu0 0.0
    %211 = vmatprep.subr.mxu0 0.0
    %212 = vmatpush1.msra.mxu0 0.0
    %213 = vmatprep.subr.mxu0 0.0
    %214 = vmatpush1.msra.mxu0 0.0
    %215 = vmatprep.subr.mxu0 0.0
    %216 = vmatpush1.msra.mxu0 0.0
    %217 = vmatprep.subr.mxu0 0.0
    %218 = vmatpush1.msra.mxu0 0.0
    %219 = vmatprep.subr.mxu0 0.0
    %220 = vmatpush1.msra.mxu0 0.0
    %221 = vmatprep.subr.mxu0 0.0
    %222 = vmatpush1.msra.mxu0 0.0
    %223 = vmatprep.subr.mxu0 0.0
    %224 = vmatpush1.msra.mxu0 0.0
    %225 = vmatprep.subr.mxu0 0.0
    %226 = vmatpush1.msra.mxu0 0.0
    %227 = vmatprep.subr.mxu0 0.0
    %228 = vmatpush1.msra.mxu0 0.0
    %229 = vmatprep.subr.mxu0 0.0
    %230 = vmatpush1.msra.mxu0 0.0
    %231 = vmatprep.subr.mxu0 0.0
    %232 = vmatpush1.msra.mxu0 0.0
    %233 = vmatprep.subr.mxu0 0.0
    %234 = vmatpush1.msra.mxu0 0.0
    %235 = vmatprep.subr.mxu0 0.0
    %236 = vmatpush1.msra.mxu0 0.0
    %237 = vmatprep.subr.mxu0 0.0
    %238 = vmatpush1.msra.mxu0 0.0
    %239 = vmatprep.subr.mxu0 0.0
    %240 = vmatpush1.msra.mxu0 0.0
    %241 = vmatprep.subr.mxu0 0.0
    %242 = vmatpush1.msra.mxu0 0.0
    %243 = vmatprep.subr.mxu0 0.0
    %244 = vmatpush1.msra.mxu0 0.0
    %245 = vmatprep.subr.mxu0 0.0
    %246 = vmatpush1.msra.mxu0 0.0
    %247 = vmatprep.subr.mxu0 0.0
    %248 = vmatpush1.msra.mxu0 0.0
    %249 = vmatprep.subr.mxu0 0.0
    %250 = vmatpush1.msra.mxu0 0.0
    %251 = vmatprep.subr.mxu0 0.0
    %252 = vmatpush1.msra.mxu0 0.0
    %253 = vmatprep.subr.mxu0 0.0
    %254 = vmatpush1.msra.mxu0 0.0
    %255 = vmatprep.subr.mxu0 0.0
    %256 = vmatpush1.msra.mxu0 0.0
    %257 = vmatprep.subr.mxu0 0.0
    %258 = vmatpush1.msra.mxu0 0.0
    %259 = vmatprep.subr.mxu0 0.0
    %260 = vmatpush1.msra.mxu0 0.0
    %261 = vmatprep.subr.mxu0 0.0
    %262 = vmatpush1.msra.mxu0 0.0
    %263 = vmatprep.subr.mxu0 0.0
    %264 = vmatpush1.msra.mxu0 0.0
    %265 = vmatprep.mubr.f32.mxu0 0.0
    %266 = vmatmul.mubr.f32.gmra.mrb[0].mxu0 %v199
    %v267 = vpop.f32.mrb[0].mxu0
    %v268 = vadd.f32 0.0, %v267
    %v269 = vpop.f32.mrb[0].mxu0
    %v270 = vadd.f32 0.0, %v269
    %271 = vdwg.mxu0
    %v272 = vxor.u32 %v268, 2147483648
    %v273 = vxor.u32 %v270, 2147483648
    %v274 = vmul.f32 %v272, 1.442695
    %v275 = vpow.pop %v274
    %v276 = vmul.f32 %v273, 1.442695
    %v277 = vpow.pop %v276
    %v278 = vadd.f32 %v275, 1.0
    %v279 = vadd.f32 %v277, 1.0
    %v280 = vrcp.pop %v278
    %v281 = vmul.f32 1.0, %v280
    %v282 = vrcp.pop %v279
    %v283 = vmul.f32 1.0, %v282
    %285 = vset.pattern.permute.xlu0 0
    %286 = vperm.xlu0 %285, %v196
    %v287 = vpop.permute.xlu0 %286
    %v289 = vadd.f32 %v287, %v281
    %v290 = vadd.f32 %v287, %v283
    %v291 = vmul.f32 %v30, %v289
    %v292 = vmul.f32 %v31, %v290
    %293 = vst [vmem:[#allocation5] sm:$0xff] %v291
    %294 = vst [vmem:[#allocation5 + $0x8] sm:$0xff] %v292
    // Predicated region
    $region22: #{tpu_custom_call.1} parent=1 // pred_check
      _
    $region23: #{tpu_custom_call.1} parent=1 // pred_check_branch
      %296 = sbr.rel (0) target = $region25
    $region24: #{tpu_custom_call.1} parent=1 // pred_region
      %s298 = ssub.s32 256, 256
      %299 = vsyncadd [#allocation4], %s298
      %s301 = sshll.u32 [#allocation5], 4
      %s302 = int_to_ptr.vmem [resolvable:$true] %s301
      %304 = dma.vmem_to_hbm [thread:$0]  %s302, 256, %s4, [#allocation4]
    $region25: #{tpu_custom_call.1} parent=1 // pred_fallthru
      _
    // Predicated region
    $region26: #{tpu_custom_call.1} parent=1 // pred_check
      _
    $region27: #{tpu_custom_call.1} parent=1 // pred_check_branch
      %306 = sbr.rel (0) target = $region29
    $region28: #{tpu_custom_call.1} parent=1 // pred_region
      %307 = dma.done [#allocation4], 256
    $region29: #{tpu_custom_call.1} parent=1 // pred_fallthru
      _
    %308 = vsyncpa [#allocation3], 1
    %309 = vsyncpa [#allocation4], 1

</llo_original>
